<compile_context>
chip_gen: v7x
topology: tpu7x:2x2x1
jax: 0.10.0
libtpu: 0.0.40
codegen_flags: <defaults>
</compile_context>

<pallas_src>
import jax
import jax.numpy as jnp
from jax.experimental import pallas as pl
from jax.experimental.pallas import tpu as pltpu


def _round_up(x: int, m: int) -> int:
    return (x + m - 1) // m * m


def _cdiv(a: int, b: int) -> int:
    return -(-a // b)


_FAST_PATH_VMEM_BUDGET = 40 * 1024 * 1024   # max buffer bytes for the single-K-pass path
_DEFAULT_SCOPED_VMEM = 12 * 1024 * 1024     # below this, leave vmem_limit_bytes alone


# ---------------------------------------------------------------------------
# Fast path: whole K reduction in one MXU pass, weight stripe VMEM-resident.
# ---------------------------------------------------------------------------
def _lr_fused_kernel(x_ref, w_ref, b_ref, o_ref):
    # bf16 operands, f32 MXU accumulation.
    z = jnp.dot(x_ref[...], w_ref[...], preferred_element_type=jnp.float32)
    z = z + b_ref[...]
    # sigmoid(z) = 0.5 * (tanh(z / 2) + 1): a single EUP push per vreg.
    o_ref[...] = (0.5 * (jnp.tanh(0.5 * z) + 1.0)).astype(o_ref.dtype)


# ---------------------------------------------------------------------------
# Fallback: K-tiled (M, N, K) reduction with an f32 VMEM accumulator.
# ---------------------------------------------------------------------------
def _lr_tiled_kernel(x_ref, w_ref, b_ref, o_ref, acc_ref):
    k = pl.program_id(2)

    @pl.when(k == 0)
    def _init():
        # Fold the bias into the accumulator init (bias block is K-resident).
        acc_ref[...] = jnp.broadcast_to(b_ref[...], acc_ref.shape)

    acc_ref[...] += jnp.dot(x_ref[...], w_ref[...],
                            preferred_element_type=jnp.float32)

    @pl.when(k == pl.num_programs(2) - 1)
    def _epilogue():
        z = acc_ref[...]
        o_ref[...] = (0.5 * (jnp.tanh(0.5 * z) + 1.0)).astype(o_ref.dtype)


def _compiler_params(needed_bytes, dims):
    vmem_limit = None
    if needed_bytes > _DEFAULT_SCOPED_VMEM:
        vmem_limit = min(int(needed_bytes * 3 // 2) + (2 << 20), 48 << 20)
    return pltpu.CompilerParams(dimension_semantics=dims,
                                vmem_limit_bytes=vmem_limit)


def logistic_regression(x, w_t, b, *, tm=512, tn=256, tk=1024):
    """x: (B, D_in) f32, w_t: (D_in, D_out) f32, b: (D_out,) f32 -> (B, D_out) f32."""
    out_dtype = x.dtype
    B, D_in = x.shape
    D_out = w_t.shape[1]

    # Batch: pad only to the 8-sublane granule (cheap); M grid uses cdiv below.
    # TODO(synk): callers should pass 8-aligned batch to avoid even this copy.
    Bp = _round_up(B, 8)
    if Bp != B:
        x = jnp.pad(x, ((0, Bp - B), (0, 0)))

    # Lane-dense output: pad D_out (weight/bias only — tiny one-time copies).
    Np = _round_up(D_out, 128)
    tn = 256 if (Np % 256 == 0 and Np > 128) else 128
    tn = min(tn, Np)
    Ng = Np // tn

    w_p = jnp.pad(w_t, ((0, 0), (0, Np - D_out))) if Np != D_out else w_t
    b_p = jnp.pad(b, (0, Np - D_out)).reshape(1, Np).astype(jnp.float32)

    # bf16 operands (f32 accumulation stays inside the kernel).
    x_bf = x.astype(jnp.bfloat16)
    w_bf = w_p.astype(jnp.bfloat16)

    # ---------------- fast path: collapse the K grid entirely ----------------
    def fast_bytes(tm_):
        return (2 * tm_ * D_in * 2      # x tiles (bf16, double-buffered)
                + 2 * D_in * tn * 2     # w tiles (bf16)
                + 2 * tn * 4            # bias tile (f32)
                + 2 * tm_ * tn * 4)     # out tiles (f32)

    tm_fast = min(tm, Bp)
    while fast_bytes(tm_fast) > _FAST_PATH_VMEM_BUDGET and tm_fast > 8:
        tm_fast = max(_round_up(tm_fast // 2, 8), 8)
    use_fast = fast_bytes(tm_fast) <= _FAST_PATH_VMEM_BUDGET

    if use_fast:
        Mg = _cdiv(Bp, tm_fast)
        # Keep >=2 parallel tiles so v7x's second TensorCore has work.
        if Mg * Ng < 2 and Bp >= 16:
            tm_fast = _round_up((Bp + 1) // 2, 8)
            Mg = _cdiv(Bp, tm_fast)

        out_p = pl.pallas_call(
            _lr_fused_kernel,
            out_shape=jax.ShapeDtypeStruct((Bp, Np), out_dtype),
            grid_spec=pltpu.PrefetchScalarGridSpec(
                num_scalar_prefetch=0,
                grid=(Mg, Ng),
                in_specs=[
                    pl.BlockSpec((tm_fast, D_in), lambda i, j: (i, 0)),  # x
                    pl.BlockSpec((D_in, tn), lambda i, j: (0, j)),       # w
                    pl.BlockSpec((1, tn), lambda i, j: (0, j)),          # bias
                ],
                out_specs=pl.BlockSpec((tm_fast, tn), lambda i, j: (i, j)),
            ),
            compiler_params=_compiler_params(fast_bytes(tm_fast),
                                             ("parallel", "parallel")),
            cost_estimate=pl.CostEstimate(
                flops=2 * Bp * D_in * Np,
                transcendentals=Bp * Np,
                bytes_accessed=(2 * Bp * D_in * Ng      # x re-read per N tile
                                + 2 * D_in * Np * Mg    # w re-read per M tile
                                + 4 * Np * Mg
                                + 4 * Bp * Np),
            ),
        )(x_bf, w_bf, b_p)
        return out_p[:B, :D_out]

    # ---------------- fallback: K-tiled reduction for huge D_in ----------------
    tk = min(tk, _round_up(D_in, 128))
    Kp = _round_up(D_in, tk)
    if Kp != D_in:   # zero-pad K: required for reduction correctness
        x_bf = jnp.pad(x_bf, ((0, 0), (0, Kp - D_in)))
        w_bf = jnp.pad(w_bf, ((0, Kp - D_in), (0, 0)))
    Kg = Kp // tk

    tm_t = min(tm, Bp)
    Mg = _cdiv(Bp, tm_t)
    if Mg * Ng < 2 and Bp >= 16:
        tm_t = _round_up((Bp + 1) // 2, 8)
        Mg = _cdiv(Bp, tm_t)

    needed = (2 * tm_t * tk * 2 + 2 * tk * tn * 2 + 2 * tn * 4
              + 2 * tm_t * tn * 4 + tm_t * tn * 4)

    out_p = pl.pallas_call(
        _lr_tiled_kernel,
        out_shape=jax.ShapeDtypeStruct((Bp, Np), out_dtype),
        grid_spec=pltpu.PrefetchScalarGridSpec(
            num_scalar_prefetch=0,
            grid=(Mg, Ng, Kg),
            in_specs=[
                pl.BlockSpec((tm_t, tk), lambda i, j, k: (i, k)),   # x
                pl.BlockSpec((tk, tn), lambda i, j, k: (k, j)),     # w
                pl.BlockSpec((1, tn), lambda i, j, k: (0, j)),      # bias, K-resident
            ],
            out_specs=pl.BlockSpec((tm_t, tn), lambda i, j, k: (i, j)),
            scratch_shapes=[pltpu.VMEM((tm_t, tn), jnp.float32)],
        ),
        compiler_params=_compiler_params(needed,
                                         ("parallel", "parallel", "arbitrary")),
        cost_estimate=pl.CostEstimate(
            flops=2 * Bp * Kp * Np,
            transcendentals=Bp * Np,
            bytes_accessed=(2 * Bp * Kp * Ng + 2 * Kp * Np * Mg
                            + 4 * Np * Mg + 4 * Bp * Np),
        ),
    )(x_bf, w_bf, b_p)
    return out_p[:B, :D_out]


if __name__ == "__main__":
    # Deterministic synthetic parameters (mimicking nn.Linear(input_dim, output_dim)).
    batch, input_dim, output_dim = 8, 32, 16

    key = jax.random.PRNGKey(0)
    kx, kw, kb = jax.random.split(key, 3)

    x = jax.random.normal(kx, (batch, input_dim), dtype=jnp.float32)
    bound = 1.0 / (input_dim ** 0.5)
    # torch stores weight as (output_dim, input_dim); we keep the transposed layout.
    w_t = jax.random.uniform(kw, (input_dim, output_dim), dtype=jnp.float32,
                             minval=-bound, maxval=bound)
    b = jax.random.uniform(kb, (output_dim,), dtype=jnp.float32,
                           minval=-bound, maxval=bound)

    out = logistic_regression(x, w_t, b)
    jax.block_until_ready(out)

    # Reference matches the kernel's numerics: bf16 operands, f32 accumulation.
    xb = x.astype(jnp.bfloat16).astype(jnp.float32)
    wb = w_t.astype(jnp.bfloat16).astype(jnp.float32)
    ref = jax.nn.sigmoid(xb @ wb + b)

    assert out.shape == (batch, output_dim)
    err = float(jnp.max(jnp.abs(out - ref)))
    assert jnp.allclose(out, ref, atol=2e-3, rtol=2e-3), err

    print("KERNEL_OK")
</pallas_src>

<mosaic_0001>
module attributes {stable_mosaic.version = 11 : i64} {
  func.func @_lr_fused_kernel(%arg0: i32, %arg1: i32, %arg2: memref<8x32xbf16, #tpu.memory_space<vmem>>, %arg3: memref<32x128xbf16, #tpu.memory_space<vmem>>, %arg4: memref<1x128xf32, #tpu.memory_space<vmem>>, %arg5: memref<8x128xf32, #tpu.memory_space<vmem>>) attributes {dimension_semantics = [#tpu.dimension_semantics<parallel>, #tpu.dimension_semantics<parallel>], iteration_bounds = array<i64: 1, 1>, scalar_prefetch = 0 : i64, scratch_operands = 0 : i64, tpu.core_type = #tpu.core_type<tc>, window_params = [{transform_indices = @transform_0, window_bounds = array<i64: 8, 32>}, {transform_indices = @transform_1, window_bounds = array<i64: 32, 128>}, {transform_indices = @transform_2, window_bounds = array<i64: 1, 128>}, {transform_indices = @transform_3, window_bounds = array<i64: 8, 128>}]} {
    %c0 = arith.constant 0 : index
    %c0_0 = arith.constant 0 : index
    %0 = vector.load %arg2[%c0, %c0_0] : memref<8x32xbf16, #tpu.memory_space<vmem>>, vector<8x32xbf16>
    %c0_1 = arith.constant 0 : index
    %c0_2 = arith.constant 0 : index
    %1 = vector.load %arg3[%c0_1, %c0_2] : memref<32x128xbf16, #tpu.memory_space<vmem>>, vector<32x128xbf16>
    %cst = arith.constant dense<0.000000e+00> : vector<8x128xf32>
    %2 = tpu.matmul %0, %1, %cst {dimension_numbers = #tpu.dot_dimension_numbers<[1], [0], [0], [1], [0, 0, 1, 1], [], []>} : vector<8x32xbf16>, vector<32x128xbf16>, vector<8x128xf32> -> vector<8x128xf32>
    %c0_3 = arith.constant 0 : index
    %c0_4 = arith.constant 0 : index
    %3 = vector.load %arg4[%c0_3, %c0_4] : memref<1x128xf32, #tpu.memory_space<vmem>>, vector<1x128xf32>
    %4 = vector.broadcast %3 : vector<1x128xf32> to vector<8x128xf32>
    %5 = arith.addf %2, %4 : vector<8x128xf32>
    %cst_5 = arith.constant 5.000000e-01 : f32
    %6 = vector.broadcast %cst_5 : f32 to vector<8x128xf32>
    %7 = arith.mulf %6, %5 : vector<8x128xf32>
    %8 = math.tanh %7 : vector<8x128xf32>
    %cst_6 = arith.constant 1.000000e+00 : f32
    %9 = vector.broadcast %cst_6 : f32 to vector<8x128xf32>
    %10 = arith.addf %8, %9 : vector<8x128xf32>
    %cst_7 = arith.constant 5.000000e-01 : f32
    %11 = vector.broadcast %cst_7 : f32 to vector<8x128xf32>
    %12 = arith.mulf %11, %10 : vector<8x128xf32>
    %c0_8 = arith.constant 0 : index
    %c0_9 = arith.constant 0 : index
    %13 = vector.load %arg5[%c0_8, %c0_9] : memref<8x128xf32, #tpu.memory_space<vmem>>, vector<8x128xf32>
    tpu.vector_store %arg5[%c0_8, %c0_9], %12 {strides = array<i32>} : memref<8x128xf32, #tpu.memory_space<vmem>>, vector<8x128xf32>,
    return
  }
  func.func @transform_0(%arg0: i32, %arg1: i32) -> (i32, i32) {
    %c0_i32 = arith.constant 0 : i32
    %c0_i32_0 = arith.constant 0 : i32
    return %arg0, %c0_i32 : i32, i32
  }
  func.func @transform_1(%arg0: i32, %arg1: i32) -> (i32, i32) {
    %c0_i32 = arith.constant 0 : i32
    %c0_i32_0 = arith.constant 0 : i32
    return %c0_i32, %arg1 : i32, i32
  }
  func.func @transform_2(%arg0: i32, %arg1: i32) -> (i32, i32) {
    %c0_i32 = arith.constant 0 : i32
    %c0_i32_0 = arith.constant 0 : i32
    return %c0_i32, %arg1 : i32, i32
  }
  func.func @transform_3(%arg0: i32, %arg1: i32) -> (i32, i32) {
    %c0_i32 = arith.constant 0 : i32
    return %arg0, %arg1 : i32, i32
  }
}

</mosaic_0001>

<llo_original>
// kernel: tpu_custom_call.1
$region0: #{tpu_custom_call.1}
  #allocation0 [shape = 'u32[]', space=smem, size = 0x4, offset = 0x4, fixed_abs, tag = 'smem constant byte address 0x4 - core index']
  #allocation1 [shape = 'u32[144,128]{1,0:T(1,128)}', space=vmem, size = 0x12000, scoped, tag = 'internal scratch']
  %s0 = inlined_call_operand.hbm [shape: bf16[8,32], index: 0, kind: input, shape index: {}]
  %s1 = inlined_call_operand.hbm [shape: bf16[32,128], index: 1, kind: input, shape index: {}]
  %s2 = inlined_call_operand.vmem [shape: f32[1,128], index: 2, kind: input, shape index: {}]
  %s3 = inlined_call_operand.hbm [shape: f32[8,128], index: 3, kind: output, shape index: {}]
  %s4 = sld [smem:[#allocation0]]
  $region30: #{tpu_custom_call.1} parent=0
    _
  %s6 = ssub.s32 1, %s4
  %s7 = scalar_select 0, %s6, %s4
  $region1: #{tpu_custom_call.1} parent=0
    #allocation2 [shape = 'u8[2048]{0}', space=vmem, size = 0x800, scoped, tag = 'input window, operand 0, single buffered']
    #allocation3 [shape = 's32[1]{0}', space=sflag, size = 0x4, scoped, tag = 'scoped memory for tpu_custom_call.1']
    #allocation4 [shape = 's32[1]{0}', space=sflag, size = 0x4, scoped, tag = 'scoped memory for tpu_custom_call.1']
    #allocation5 [shape = 'u8[8192]{0}', space=vmem, size = 0x2000, scoped, tag = 'input window, operand 1, single buffered']
    #allocation6 [shape = 's32[1]{0}', space=sflag, size = 0x4, scoped, tag = 'scoped memory for tpu_custom_call.1']
    #allocation7 [shape = 'u8[4096]{0}', space=vmem, size = 0x1000, scoped, tag = 'output window, operand 0, single buffered']
    %8 = vsyncpa [#allocation3], 0
    %9 = vsyncpa [#allocation6], 0
    %10 = vsyncpa [#allocation4], 0
    // Predicated region
    $region2: #{tpu_custom_call.1} parent=1 // pred_check
      _
    $region3: #{tpu_custom_call.1} parent=1 // pred_check_branch
      %12 = sbr.rel (0) target = $region5
    $region4: #{tpu_custom_call.1} parent=1 // pred_region
      %s14 = ssub.s32 64, 64
      %15 = vsyncadd [#allocation3], %s14
      %s17 = sshll.u32 [#allocation2], 4
      %s18 = int_to_ptr.vmem [resolvable:$true] %s17
      %20 = dma.hbm_to_vmem [thread:$0]  %s0, 64, %s18, [#allocation3]
    $region5: #{tpu_custom_call.1} parent=1 // pred_fallthru
      _
    // Predicated region
    $region6: #{tpu_custom_call.1} parent=1 // pred_check
      _
    $region7: #{tpu_custom_call.1} parent=1 // pred_check_branch
      %22 = sbr.rel (0) target = $region9
    $region8: #{tpu_custom_call.1} parent=1 // pred_region
      %s24 = ssub.s32 256, 256
      %25 = vsyncadd [#allocation6], %s24
      %s26 = sshll.u32 [#allocation5], 4
      %s27 = int_to_ptr.vmem [resolvable:$true] %s26
      %32 = dma.hbm_to_vmem [thread:$0]  %s1, 256, %s27, [#allocation6], 64, 64, 4
    $region9: #{tpu_custom_call.1} parent=1 // pred_fallthru
      _
    // Predicated region
    $region10: #{tpu_custom_call.1} parent=1 // pred_check
      _
    $region11: #{tpu_custom_call.1} parent=1 // pred_check_branch
      %34 = sbr.rel (0) target = $region13
    $region12: #{tpu_custom_call.1} parent=1 // pred_region
      _
    $region13: #{tpu_custom_call.1} parent=1 // pred_fallthru
      _
    // Predicated region
    $region14: #{tpu_custom_call.1} parent=1 // pred_check
      _
    $region15: #{tpu_custom_call.1} parent=1 // pred_check_branch
      %36 = sbr.rel (0) target = $region17
    $region16: #{tpu_custom_call.1} parent=1 // pred_region
      %37 = dma.done [#allocation3], 64
    $region17: #{tpu_custom_call.1} parent=1 // pred_fallthru
      _
    // Predicated region
    $region18: #{tpu_custom_call.1} parent=1 // pred_check
      _
    $region19: #{tpu_custom_call.1} parent=1 // pred_check_branch
      %39 = sbr.rel (0) target = $region21
    $region20: #{tpu_custom_call.1} parent=1 // pred_region
      %40 = dma.done [#allocation6], 256
    $region21: #{tpu_custom_call.1} parent=1 // pred_fallthru
      _
    %v42 = vld [vmem:[#allocation2] sm:$0xf]
    %v43 = vld [vmem:[#allocation5] sm:$0xf]
    %v44 = vld [vmem:[#allocation5 + $0x4] sm:$0xf]
    %v45 = vld [vmem:[#allocation5 + $0x8] sm:$0xf]
    %v46 = vld [vmem:[#allocation5 + $0xc] sm:$0xf]
    %v47 = vld [vmem:[%s2] sm:$0x1]
    %v49 = vlaneseq
    %v50 = vshrl.u32 %v49, 7
    %v51 = vsub.s32 0, %v50
    %v52 = vrot.slane %v47, %v51
    %v58 = vunpack.c.l.b16 %v43
    %v59 = vunpack.c.l.b16 %v44
    %v60 = vunpack.c.l.b16 %v45
    %v61 = vunpack.c.l.b16 %v46
    %v62 = vpack.c.b16 %v59, %v58
    %v63 = vpack.c.b16 %v61, %v60
    %vm66 = vcmask 261120
    %v68 = vsel %vm66, %v42, 0
    %70 = vmatprep.subr.bf16.mxu0 0
    %71 = vmatpush1.bf16.msra.mxu0 %v62
    %72 = vmatprep.subr.bf16.mxu0 0
    %73 = vmatpush1.bf16.msra.mxu0 %v63
    %74 = vmatprep.subr.bf16.mxu0 0
    %75 = vmatpush1.bf16.msra.mxu0 0
    %76 = vmatprep.subr.bf16.mxu0 0
    %77 = vmatpush1.bf16.msra.mxu0 0
    %78 = vmatprep.subr.bf16.mxu0 0
    %79 = vmatpush1.bf16.msra.mxu0 0
    %80 = vmatprep.subr.bf16.mxu0 0
    %81 = vmatpush1.bf16.msra.mxu0 0
    %82 = vmatprep.subr.bf16.mxu0 0
    %83 = vmatpush1.bf16.msra.mxu0 0
    %84 = vmatprep.subr.bf16.mxu0 0
    %85 = vmatpush1.bf16.msra.mxu0 0
    %86 = vmatprep.subr.bf16.mxu0 0
    %87 = vmatpush1.bf16.msra.mxu0 0
    %88 = vmatprep.subr.bf16.mxu0 0
    %89 = vmatpush1.bf16.msra.mxu0 0
    %90 = vmatprep.subr.bf16.mxu0 0
    %91 = vmatpush1.bf16.msra.mxu0 0
    %92 = vmatprep.subr.bf16.mxu0 0
    %93 = vmatpush1.bf16.msra.mxu0 0
    %94 = vmatprep.subr.bf16.mxu0 0
    %95 = vmatpush1.bf16.msra.mxu0 0
    %96 = vmatprep.subr.bf16.mxu0 0
    %97 = vmatpush1.bf16.msra.mxu0 0
    %98 = vmatprep.subr.bf16.mxu0 0
    %99 = vmatpush1.bf16.msra.mxu0 0
    %100 = vmatprep.subr.bf16.mxu0 0
    %101 = vmatpush1.bf16.msra.mxu0 0
    %102 = vmatprep.mubr.bf16.mxu0 0
    %103 = vmatmul.mubr.bf16.gmra.mrb[0].mxu0 %v68
    %v104 = vpop.f32.mrb[0].mxu0
    %v105 = vadd.f32 %v52, %v104
    %v106 = vpop.f32.mrb[0].mxu0
    %v107 = vpop.f32.mrb[0].mxu0
    %v108 = vpop.f32.mrb[0].mxu0
    %109 = vdwg.mxu0
    %v110 = vmul.f32 %v105, 0.5
    %v111 = vtanh.pop %v110
    %v112 = vadd.f32 %v111, 1.0
    %v113 = vmul.f32 %v112, 0.5
    %114 = vst [vmem:[#allocation7] sm:$0xff] %v113
    // Predicated region
    $region22: #{tpu_custom_call.1} parent=1 // pred_check
      _
    $region23: #{tpu_custom_call.1} parent=1 // pred_check_branch
      %116 = sbr.rel (0) target = $region25
    $region24: #{tpu_custom_call.1} parent=1 // pred_region
      %s118 = ssub.s32 128, 128
      %119 = vsyncadd [#allocation4], %s118
      %s121 = sshll.u32 [#allocation7], 4
      %s122 = int_to_ptr.vmem [resolvable:$true] %s121
      %124 = dma.vmem_to_hbm [thread:$0]  %s122, 128, %s3, [#allocation4]
    $region25: #{tpu_custom_call.1} parent=1 // pred_fallthru
      _
    // Predicated region
    $region26: #{tpu_custom_call.1} parent=1 // pred_check
      _
    $region27: #{tpu_custom_call.1} parent=1 // pred_check_branch
      %126 = sbr.rel (0) target = $region29
    $region28: #{tpu_custom_call.1} parent=1 // pred_region
      %127 = dma.done [#allocation4], 128
    $region29: #{tpu_custom_call.1} parent=1 // pred_fallthru
      _
    %128 = vsyncpa [#allocation3], 1
    %129 = vsyncpa [#allocation6], 1
    %130 = vsyncpa [#allocation4], 1

</llo_original>
